<compile_context>
chip_gen: v6e
topology: v6e:2x2x1
jax: 0.10.0
libtpu: 0.0.40
codegen_flags: <defaults>
</compile_context>

<pallas_src>
import functools

import jax
import jax.numpy as jnp
from jax.experimental import pallas as pl
from jax.experimental.pallas import tpu as pltpu

_ISSUE_UNROLL = 8  # rows issued per unrolled step of the DMA-descriptor loop


# ---------------------------------------------------------------------------
# Fast path: both embedding tables are VMEM-resident; gather via one-hot MXU
# matmul (exact in f32, no per-row DMA descriptors at all).
# ---------------------------------------------------------------------------
def _bpr_vmem_kernel(uidx_ref, iidx_ref, utab_ref, itab_ref, out_ref):
    TB = uidx_ref.shape[0]
    nu = utab_ref.shape[0]
    ni = itab_ref.shape[0]

    uids = uidx_ref[...]                                    # (TB, 1) int32
    iids = iidx_ref[...]                                    # (TB, 1) int32

    # One-hot gather: (TB, NR) @ (NR, F) selects exactly one table row per
    # batch row.  Guaranteed to lower (compare + iota + MXU matmul) and exact
    # in f32 (products are 0*x or 1*x).
    oh_u = (uids == jax.lax.broadcasted_iota(jnp.int32, (TB, nu), 1)).astype(jnp.float32)
    oh_i = (iids == jax.lax.broadcasted_iota(jnp.int32, (TB, ni), 1)).astype(jnp.float32)
    u = jnp.dot(oh_u, utab_ref[...].astype(jnp.float32),
                preferred_element_type=jnp.float32)          # (TB, F)
    v = jnp.dot(oh_i, itab_ref[...].astype(jnp.float32),
                preferred_element_type=jnp.float32)          # (TB, F)

    dots = jnp.sum(u * v, axis=-1)                           # (TB,)
    out_ref[...] = dots[None, :].astype(out_ref.dtype)       # lane-dense (1, TB)


def _forward_vmem_tables(user_idx, item_idx, user_table, item_table, tile_b):
    B = user_idx.shape[0]
    NU, F = user_table.shape
    NI, _ = item_table.shape

    TB = int(tile_b) if tile_b is not None else (256 if B >= 256 else 128)
    assert TB % 128 == 0, "tile_b must be a multiple of 128"

    num_tiles = pl.cdiv(B, TB)
    b_pad = num_tiles * TB
    uidx = _pad_indices(user_idx, b_pad).reshape(b_pad, 1)
    iidx = _pad_indices(item_idx, b_pad).reshape(b_pad, 1)

    out = pl.pallas_call(
        _bpr_vmem_kernel,
        out_shape=jax.ShapeDtypeStruct((num_tiles, TB), jnp.float32),
        grid=(num_tiles,),
        in_specs=[
            pl.BlockSpec((TB, 1), lambda t: (t, 0)),         # user ids
            pl.BlockSpec((TB, 1), lambda t: (t, 0)),         # item ids
            pl.BlockSpec((NU, F), lambda t: (0, 0)),         # table resident in VMEM
            pl.BlockSpec((NI, F), lambda t: (0, 0)),         # table resident in VMEM
        ],
        out_specs=pl.BlockSpec((1, TB), lambda t: (t, 0)),   # lane-dense output
        compiler_params=pltpu.CompilerParams(
            dimension_semantics=("parallel",),               # tiles are independent
            vmem_limit_bytes=32 * 1024 * 1024),
    )(uidx, iidx, user_table, item_table)
    return out.reshape(-1)[:B]


# ---------------------------------------------------------------------------
# General path: tables stay in HBM (pl.ANY); per-row gather DMAs with
# cross-tile double buffering, bulk semaphore waits, unrolled issue loop.
# ---------------------------------------------------------------------------
def _bpr_gather_kernel(unroll,
                       uidx_ref, iidx_ref,       # SMEM scalar-prefetch (B_pad,) int32
                       utab_ref, itab_ref,       # HBM tables (pl.ANY)
                       out_ref,                  # (1, TB) VMEM output block
                       ubuf, ibuf, sems):        # (2,TB,F) VMEM x2, DMA sems (2,2)
    TB = ubuf.shape[1]
    t = pl.program_id(0)
    nt = pl.num_programs(0)
    slot = t % 2

    def issue_tile(tile, dst_slot):
        base = tile * TB

        @pl.loop(0, TB // unroll)
        def _issue(blk):
            r0 = blk * unroll
            # Manual unroll: lets the scheduler pack SMEM index reads +
            # address math with the one-descriptor-per-bundle push slot.
            for j in range(unroll):
                r = r0 + j
                u = uidx_ref[base + r]
                i = iidx_ref[base + r]
                pltpu.make_async_copy(utab_ref.at[u], ubuf.at[dst_slot, r],
                                      sems.at[dst_slot, 0]).start()
                pltpu.make_async_copy(itab_ref.at[i], ibuf.at[dst_slot, r],
                                      sems.at[dst_slot, 1]).start()

    # Prime the pipeline: first grid step issues its own tile's gathers.
    @pl.when(t == 0)
    def _prime():
        issue_tile(0, 0)

    # Prefetch next tile into the other slot BEFORE waiting on this one,
    # overlapping its descriptor issue + HBM latency with this tile's
    # wait/compute.
    @pl.when(t + 1 < nt)
    def _prefetch_next():
        issue_tile(t + 1, 1 - slot)

    # Bulk wait: one wait per semaphore covers all TB row copies for this
    # slot (expected bytes = full (TB, F) buffer; src==dst==buffer is the
    # standard paged-attention wait pattern).  Each table waits on its own
    # buffer so the byte count is correct even with mixed table dtypes.
    pltpu.make_async_copy(ubuf.at[slot], ubuf.at[slot], sems.at[slot, 0]).wait()
    pltpu.make_async_copy(ibuf.at[slot], ibuf.at[slot], sems.at[slot, 1]).wait()

    # Full-tile compute: VPU multiply + XLU row reduce.
    u = ubuf[slot].astype(jnp.float32)                       # (TB, F)
    v = ibuf[slot].astype(jnp.float32)                       # (TB, F)
    dots = jnp.sum(u * v, axis=-1)                           # (TB,)
    out_ref[...] = dots[None, :].astype(out_ref.dtype)       # lane-dense (1, TB)


def _forward_hbm_gather(user_idx, item_idx, user_table, item_table, tile_b):
    B = user_idx.shape[0]
    _, F = user_table.shape

    if tile_b is None:
        TB = 128
        for cand in (1024, 512, 256):
            if B >= cand:
                TB = cand
                break
        # Cap double-buffered gather scratch (2 slots x 2 tables x TB x F) at
        # 12 MiB so it fits every generation's scoped-VMEM budget.
        itemsize = max(jnp.dtype(user_table.dtype).itemsize,
                       jnp.dtype(item_table.dtype).itemsize)
        while TB > 128 and 2 * 2 * TB * F * itemsize > 12 * 1024 * 1024:
            TB //= 2
    else:
        TB = int(tile_b)
    assert TB % 128 == 0 and TB % _ISSUE_UNROLL == 0

    num_tiles = pl.cdiv(B, TB)
    b_pad = num_tiles * TB
    uidx = _pad_indices(user_idx, b_pad)
    iidx = _pad_indices(item_idx, b_pad)

    grid_spec = pltpu.PrefetchScalarGridSpec(
        num_scalar_prefetch=2,                  # user_idx, item_idx land in SMEM
        grid=(num_tiles,),
        in_specs=[
            pl.BlockSpec(memory_space=pl.ANY),  # user table stays in HBM
            pl.BlockSpec(memory_space=pl.ANY),  # item table stays in HBM
        ],
        out_specs=pl.BlockSpec((1, TB), lambda t, uidx, iidx: (t, 0)),
        scratch_shapes=[
            pltpu.VMEM((2, TB, F), user_table.dtype),   # double-buffered gathers
            pltpu.VMEM((2, TB, F), item_table.dtype),
            pltpu.SemaphoreType.DMA((2, 2)),            # [slot, table]
        ],
    )

    out = pl.pallas_call(
        functools.partial(_bpr_gather_kernel, _ISSUE_UNROLL),
        out_shape=jax.ShapeDtypeStruct((num_tiles, TB), jnp.float32),
        grid_spec=grid_spec,
        compiler_params=pltpu.CompilerParams(
            # Cross-tile prefetch carries state across grid steps, so the
            # grid must run sequentially (no megacore split of this axis).
            dimension_semantics=("arbitrary",),
            vmem_limit_bytes=32 * 1024 * 1024),
    )(uidx, iidx, user_table, item_table)
    return out.reshape(-1)[:B]


# ---------------------------------------------------------------------------
# Public wrapper
# ---------------------------------------------------------------------------
def _pad_indices(idx, b_pad):
    B = idx.shape[0]
    if b_pad != B:
        # Pad with row 0 (always valid); padded results are sliced off later.
        idx = jnp.concatenate([idx, jnp.zeros((b_pad - B,), jnp.int32)])
    return idx


def bpr_mf_forward(user_idx, item_idx, user_table, item_table, *,
                   tile_b=None, force_dma_gather=False):
    """Pallas forward of bprMF.

    Args:
      user_idx:   (B,) integer user ids
      item_idx:   (B,) integer item ids
      user_table: (num_users, F) float32/bfloat16 user embedding table
      item_table: (num_items, F) float32/bfloat16 item embedding table
    Returns:
      (B,) float32 per-row dot products.
    """
    NU, F = user_table.shape
    NI, F2 = item_table.shape
    assert F == F2

    user_idx = user_idx.astype(jnp.int32)
    item_idx = item_idx.astype(jnp.int32)

    itemsize = max(jnp.dtype(user_table.dtype).itemsize,
                   jnp.dtype(item_table.dtype).itemsize)
    # Conservative VMEM-residency threshold (sized for v7x's 64 MiB VMEM and
    # for the one-hot intermediates the fast path builds).
    tables_fit_vmem = (max(NU, NI) <= 2048 and
                       (NU + NI) * F * itemsize <= 8 * 1024 * 1024)

    if tables_fit_vmem and not force_dma_gather:
        return _forward_vmem_tables(user_idx, item_idx, user_table, item_table, tile_b)
    return _forward_hbm_gather(user_idx, item_idx, user_table, item_table, tile_b)


def init_params(key, num_users, num_items, factors):
    """Deterministic init matching nn.init.normal_(mean=0, std=0.01)."""
    ku, ki = jax.random.split(key)
    user_table = 0.01 * jax.random.normal(ku, (num_users, factors), jnp.float32)
    item_table = 0.01 * jax.random.normal(ki, (num_items, factors), jnp.float32)
    return user_table, item_table


if __name__ == "__main__":
    key = jax.random.PRNGKey(0)

    def ref_fn(uidx, iidx, utab, itab):
        return jnp.sum(utab[uidx] * itab[iidx], axis=1)

    # --- Test 1: module's toy configuration (VMEM-resident fast path). ---
    NUM_USERS, NUM_ITEMS, FACTORS, BATCH = 64, 128, 32, 8
    kparam, kuser, kitem, key = jax.random.split(key, 4)
    user_table, item_table = init_params(kparam, NUM_USERS, NUM_ITEMS, FACTORS)
    user_idx = jax.random.randint(kuser, (BATCH,), 0, NUM_USERS, dtype=jnp.int32)
    item_idx = jax.random.randint(kitem, (BATCH,), 0, NUM_ITEMS, dtype=jnp.int32)

    out = jax.block_until_ready(
        bpr_mf_forward(user_idx, item_idx, user_table, item_table))
    ref = ref_fn(user_idx, item_idx, user_table, item_table)
    assert out.shape == (BATCH,)
    assert jnp.allclose(out, ref, atol=1e-5, rtol=1e-5), (out, ref)

    # --- Test 2: multi-tile fast path with padding. ---
    NU2, NI2, F2, B2 = 1000, 2000, 64, 384
    kparam2, ku2, ki2, key = jax.random.split(key, 4)
    utab2, itab2 = init_params(kparam2, NU2, NI2, F2)
    uidx2 = jax.random.randint(ku2, (B2,), 0, NU2, dtype=jnp.int32)
    iidx2 = jax.random.randint(ki2, (B2,), 0, NI2, dtype=jnp.int32)

    out2 = jax.block_until_ready(bpr_mf_forward(uidx2, iidx2, utab2, itab2))
    ref2 = ref_fn(uidx2, iidx2, utab2, itab2)
    assert out2.shape == (B2,)
    assert jnp.allclose(out2, ref2, atol=1e-5, rtol=1e-5)

    # --- Test 3: force the HBM DMA-gather path (exercises cross-tile double
    #     buffering, bulk semaphore waits, unrolled descriptor issue). ---
    out3 = jax.block_until_ready(
        bpr_mf_forward(uidx2, iidx2, utab2, itab2, force_dma_gather=True))
    assert out3.shape == (B2,)
    assert jnp.allclose(out3, ref2, atol=1e-5, rtol=1e-5)

    print("KERNEL_OK")
</pallas_src>

<mosaic_0001>
module attributes {stable_mosaic.version = 11 : i64} {
  func.func @_bpr_vmem_kernel(%arg0: i32, %arg1: memref<128x1xi32, #tpu.memory_space<vmem>>, %arg2: memref<128x1xi32, #tpu.memory_space<vmem>>, %arg3: memref<64x32xf32, #tpu.memory_space<vmem>>, %arg4: memref<128x32xf32, #tpu.memory_space<vmem>>, %arg5: memref<1x128xf32, #tpu.memory_space<vmem>>) attributes {dimension_semantics = [#tpu.dimension_semantics<parallel>], iteration_bounds = array<i64: 1>, scalar_prefetch = 0 : i64, scratch_operands = 0 : i64, tpu.core_type = #tpu.core_type<tc>, window_params = [{transform_indices = @transform_0, window_bounds = array<i64: 128, 1>}, {transform_indices = @transform_1, window_bounds = array<i64: 128, 1>}, {pipeline_mode = #tpu.pipeline_mode<synchronous>, transform_indices = @transform_2, window_bounds = array<i64: 64, 32>}, {pipeline_mode = #tpu.pipeline_mode<synchronous>, transform_indices = @transform_3, window_bounds = array<i64: 128, 32>}, {transform_indices = @transform_4, window_bounds = array<i64: 1, 128>}]} {
    %c0 = arith.constant 0 : index
    %c0_0 = arith.constant 0 : index
    %0 = vector.load %arg1[%c0, %c0_0] : memref<128x1xi32, #tpu.memory_space<vmem>>, vector<128x1xi32>
    %c0_1 = arith.constant 0 : index
    %c0_2 = arith.constant 0 : index
    %1 = vector.load %arg2[%c0_1, %c0_2] : memref<128x1xi32, #tpu.memory_space<vmem>>, vector<128x1xi32>
    %2 = tpu.iota {dimensions = array<i32: 1>} : vector<128x64xi32>
    %3 = vector.broadcast %0 : vector<128x1xi32> to vector<128x64xi32>
    %4 = arith.cmpi eq, %3, %2 : vector<128x64xi32>
    %5 = arith.extui %4 : vector<128x64xi1> to vector<128x64xi32>
    %6 = arith.sitofp %5 : vector<128x64xi32> to vector<128x64xf32>
    %7 = tpu.iota {dimensions = array<i32: 1>} : vector<128x128xi32>
    %8 = vector.broadcast %1 : vector<128x1xi32> to vector<128x128xi32>
    %9 = arith.cmpi eq, %8, %7 : vector<128x128xi32>
    %10 = arith.extui %9 : vector<128x128xi1> to vector<128x128xi32>
    %11 = arith.sitofp %10 : vector<128x128xi32> to vector<128x128xf32>
    %c0_3 = arith.constant 0 : index
    %c0_4 = arith.constant 0 : index
    %12 = vector.load %arg3[%c0_3, %c0_4] : memref<64x32xf32, #tpu.memory_space<vmem>>, vector<64x32xf32>
    %cst = arith.constant dense<0.000000e+00> : vector<128x32xf32>
    %13 = tpu.matmul %6, %12, %cst {dimension_numbers = #tpu.dot_dimension_numbers<[1], [0], [0], [1], [0, 0, 1, 1], [], []>} : vector<128x64xf32>, vector<64x32xf32>, vector<128x32xf32> -> vector<128x32xf32>
    %c0_5 = arith.constant 0 : index
    %c0_6 = arith.constant 0 : index
    %14 = vector.load %arg4[%c0_5, %c0_6] : memref<128x32xf32, #tpu.memory_space<vmem>>, vector<128x32xf32>
    %cst_7 = arith.constant dense<0.000000e+00> : vector<128x32xf32>
    %15 = tpu.matmul %11, %14, %cst_7 {dimension_numbers = #tpu.dot_dimension_numbers<[1], [0], [0], [1], [0, 0, 1, 1], [], []>} : vector<128x128xf32>, vector<128x32xf32>, vector<128x32xf32> -> vector<128x32xf32>
    %16 = arith.mulf %13, %15 : vector<128x32xf32>
    %cst_8 = arith.constant dense<0.000000e+00> : vector<128xf32>
    %17 = vector.multi_reduction <add>, %16, %cst_8 [1] : vector<128x32xf32> to vector<128xf32>
    %18 = vector.shape_cast %17 : vector<128xf32> to vector<1x128xf32>
    %c0_9 = arith.constant 0 : index
    %c0_10 = arith.constant 0 : index
    %19 = vector.load %arg5[%c0_9, %c0_10] : memref<1x128xf32, #tpu.memory_space<vmem>>, vector<1x128xf32>
    tpu.vector_store %arg5[%c0_9, %c0_10], %18 {strides = array<i32>} : memref<1x128xf32, #tpu.memory_space<vmem>>, vector<1x128xf32>,
    return
  }
  func.func @transform_0(%arg0: i32) -> (i32, i32) {
    %c0_i32 = arith.constant 0 : i32
    %c0_i32_0 = arith.constant 0 : i32
    return %arg0, %c0_i32 : i32, i32
  }
  func.func @transform_1(%arg0: i32) -> (i32, i32) {
    %c0_i32 = arith.constant 0 : i32
    %c0_i32_0 = arith.constant 0 : i32
    return %arg0, %c0_i32 : i32, i32
  }
  func.func @transform_2(%arg0: i32) -> (i32, i32) {
    %c0_i32 = arith.constant 0 : i32
    %c0_i32_0 = arith.constant 0 : i32
    %c0_i32_1 = arith.constant 0 : i32
    return %c0_i32, %c0_i32_0 : i32, i32
  }
  func.func @transform_3(%arg0: i32) -> (i32, i32) {
    %c0_i32 = arith.constant 0 : i32
    %c0_i32_0 = arith.constant 0 : i32
    %c0_i32_1 = arith.constant 0 : i32
    return %c0_i32, %c0_i32_0 : i32, i32
  }
  func.func @transform_4(%arg0: i32) -> (i32, i32) {
    %c0_i32 = arith.constant 0 : i32
    %c0_i32_0 = arith.constant 0 : i32
    return %arg0, %c0_i32 : i32, i32
  }
}

</mosaic_0001>

<llo_original>
// kernel: tpu_custom_call.1
$region0: #{tpu_custom_call.1}
  #allocation0 [shape = 'u32[]', space=smem, size = 0x4, offset = 0x4, fixed_abs, tag = 'smem constant byte address 0x4 - core index']
  #allocation1 [shape = 'u32[144,128]{1,0:T(1,128)}', space=vmem, size = 0x12000, scoped, tag = 'internal scratch']
  %s0 = inlined_call_operand.vmem [shape: s32[128,1], index: 0, kind: input, shape index: {}]
  %s1 = inlined_call_operand.vmem [shape: s32[128,1], index: 1, kind: input, shape index: {}]
  %s2 = inlined_call_operand.vmem [shape: f32[64,32], index: 2, kind: input, shape index: {}]
  %s3 = inlined_call_operand.vmem [shape: f32[128,32], index: 3, kind: input, shape index: {}]
  %s4 = inlined_call_operand.hbm [shape: f32[1,128], index: 4, kind: output, shape index: {}]
  %s5 = sld [smem:[#allocation0]]
  $region26: #{tpu_custom_call.1} parent=0
    _
  %s7 = ssub.s32 1, %s5
  %s8 = scalar_select 0, %s7, %s5
  $region1: #{tpu_custom_call.1} parent=0
    #allocation2 [shape = 'u8[512]{0}', space=vmem, size = 0x400, scoped, tag = 'output window, operand 0, single buffered']
    #allocation3 [shape = 's32[1]{0}', space=sflag, size = 0x4, scoped, tag = 'scoped memory for tpu_custom_call.1']
    %9 = vsyncpa [#allocation3], 0
    // Predicated region
    $region2: #{tpu_custom_call.1} parent=1 // pred_check
      _
    $region3: #{tpu_custom_call.1} parent=1 // pred_check_branch
      %11 = sbr.rel (0) target = $region5
    $region4: #{tpu_custom_call.1} parent=1 // pred_region
      _
    $region5: #{tpu_custom_call.1} parent=1 // pred_fallthru
      _
    // Predicated region
    $region6: #{tpu_custom_call.1} parent=1 // pred_check
      _
    $region7: #{tpu_custom_call.1} parent=1 // pred_check_branch
      %13 = sbr.rel (0) target = $region9
    $region8: #{tpu_custom_call.1} parent=1 // pred_region
      _
    $region9: #{tpu_custom_call.1} parent=1 // pred_fallthru
      _
    // Predicated region
    $region10: #{tpu_custom_call.1} parent=1 // pred_check
      _
    $region11: #{tpu_custom_call.1} parent=1 // pred_check_branch
      %15 = sbr.rel (0) target = $region13
    $region12: #{tpu_custom_call.1} parent=1 // pred_region
      _
    $region13: #{tpu_custom_call.1} parent=1 // pred_fallthru
      _
    // Predicated region
    $region14: #{tpu_custom_call.1} parent=1 // pred_check
      _
    $region15: #{tpu_custom_call.1} parent=1 // pred_check_branch
      %17 = sbr.rel (0) target = $region17
    $region16: #{tpu_custom_call.1} parent=1 // pred_region
      _
    $region17: #{tpu_custom_call.1} parent=1 // pred_fallthru
      _
    %v18 = vld [vmem:[%s0] sm:$0xff]
    %v19 = vld [vmem:[%s0 + $0x8] sm:$0xff]
    %v20 = vld [vmem:[%s0 + $0x10] sm:$0xff]
    %v21 = vld [vmem:[%s0 + $0x18] sm:$0xff]
    %v22 = vld [vmem:[%s0 + $0x20] sm:$0xff]
    %v23 = vld [vmem:[%s0 + $0x28] sm:$0xff]
    %v24 = vld [vmem:[%s0 + $0x30] sm:$0xff]
    %v25 = vld [vmem:[%s0 + $0x38] sm:$0xff]
    %v26 = vld [vmem:[%s0 + $0x40] sm:$0xff]
    %v27 = vld [vmem:[%s0 + $0x48] sm:$0xff]
    %v28 = vld [vmem:[%s0 + $0x50] sm:$0xff]
    %v29 = vld [vmem:[%s0 + $0x58] sm:$0xff]
    %v30 = vld [vmem:[%s0 + $0x60] sm:$0xff]
    %v31 = vld [vmem:[%s0 + $0x68] sm:$0xff]
    %v32 = vld [vmem:[%s0 + $0x70] sm:$0xff]
    %v33 = vld [vmem:[%s0 + $0x78] sm:$0xff]
    %v34 = vld [vmem:[%s1] sm:$0xff]
    %v35 = vld [vmem:[%s1 + $0x8] sm:$0xff]
    %v36 = vld [vmem:[%s1 + $0x10] sm:$0xff]
    %v37 = vld [vmem:[%s1 + $0x18] sm:$0xff]
    %v38 = vld [vmem:[%s1 + $0x20] sm:$0xff]
    %v39 = vld [vmem:[%s1 + $0x28] sm:$0xff]
    %v40 = vld [vmem:[%s1 + $0x30] sm:$0xff]
    %v41 = vld [vmem:[%s1 + $0x38] sm:$0xff]
    %v42 = vld [vmem:[%s1 + $0x40] sm:$0xff]
    %v43 = vld [vmem:[%s1 + $0x48] sm:$0xff]
    %v44 = vld [vmem:[%s1 + $0x50] sm:$0xff]
    %v45 = vld [vmem:[%s1 + $0x58] sm:$0xff]
    %v46 = vld [vmem:[%s1 + $0x60] sm:$0xff]
    %v47 = vld [vmem:[%s1 + $0x68] sm:$0xff]
    %v48 = vld [vmem:[%s1 + $0x70] sm:$0xff]
    %v49 = vld [vmem:[%s1 + $0x78] sm:$0xff]
    %v50 = vlaneseq
    %v51 = vand.u32 %v50, 127
    %52 = vset.pattern.permute.xlu0 0
    %53 = vperm.xlu0 %52, %v18
    %v54 = vpop.permute.xlu0 %53
    %55 = vset.pattern.permute.xlu0 0
    %56 = vperm.xlu0 %55, %v19
    %v57 = vpop.permute.xlu0 %56
    %58 = vset.pattern.permute.xlu0 0
    %59 = vperm.xlu0 %58, %v20
    %v60 = vpop.permute.xlu0 %59
    %61 = vset.pattern.permute.xlu0 0
    %62 = vperm.xlu0 %61, %v21
    %v63 = vpop.permute.xlu0 %62
    %64 = vset.pattern.permute.xlu0 0
    %65 = vperm.xlu0 %64, %v22
    %v66 = vpop.permute.xlu0 %65
    %67 = vset.pattern.permute.xlu0 0
    %68 = vperm.xlu0 %67, %v23
    %v69 = vpop.permute.xlu0 %68
    %70 = vset.pattern.permute.xlu0 0
    %71 = vperm.xlu0 %70, %v24
    %v72 = vpop.permute.xlu0 %71
    %73 = vset.pattern.permute.xlu0 0
    %74 = vperm.xlu0 %73, %v25
    %v75 = vpop.permute.xlu0 %74
    %76 = vset.pattern.permute.xlu0 0
    %77 = vperm.xlu0 %76, %v26
    %v78 = vpop.permute.xlu0 %77
    %79 = vset.pattern.permute.xlu0 0
    %80 = vperm.xlu0 %79, %v27
    %v81 = vpop.permute.xlu0 %80
    %82 = vset.pattern.permute.xlu0 0
    %83 = vperm.xlu0 %82, %v28
    %v84 = vpop.permute.xlu0 %83
    %85 = vset.pattern.permute.xlu0 0
    %86 = vperm.xlu0 %85, %v29
    %v87 = vpop.permute.xlu0 %86
    %88 = vset.pattern.permute.xlu0 0
    %89 = vperm.xlu0 %88, %v30
    %v90 = vpop.permute.xlu0 %89
    %91 = vset.pattern.permute.xlu0 0
    %92 = vperm.xlu0 %91, %v31
    %v93 = vpop.permute.xlu0 %92
    %94 = vset.pattern.permute.xlu0 0
    %95 = vperm.xlu0 %94, %v32
    %v96 = vpop.permute.xlu0 %95
    %97 = vset.pattern.permute.xlu0 0
    %98 = vperm.xlu0 %97, %v33
    %v99 = vpop.permute.xlu0 %98
    %vm100 = vcmp.eq.s32.totalorder %v54, %v51
    %vm101 = vcmp.eq.s32.totalorder %v57, %v51
    %vm102 = vcmp.eq.s32.totalorder %v60, %v51
    %vm103 = vcmp.eq.s32.totalorder %v63, %v51
    %vm104 = vcmp.eq.s32.totalorder %v66, %v51
    %vm105 = vcmp.eq.s32.totalorder %v69, %v51
    %vm106 = vcmp.eq.s32.totalorder %v72, %v51
    %vm107 = vcmp.eq.s32.totalorder %v75, %v51
    %vm108 = vcmp.eq.s32.totalorder %v78, %v51
    %vm109 = vcmp.eq.s32.totalorder %v81, %v51
    %vm110 = vcmp.eq.s32.totalorder %v84, %v51
    %vm111 = vcmp.eq.s32.totalorder %v87, %v51
    %vm112 = vcmp.eq.s32.totalorder %v90, %v51
    %vm113 = vcmp.eq.s32.totalorder %v93, %v51
    %vm114 = vcmp.eq.s32.totalorder %v96, %v51
    %vm115 = vcmp.eq.s32.totalorder %v99, %v51
    %v116 = vsel %vm100, 1, 0
    %v117 = vsel %vm101, 1, 0
    %v118 = vsel %vm102, 1, 0
    %v119 = vsel %vm103, 1, 0
    %v120 = vsel %vm104, 1, 0
    %v121 = vsel %vm105, 1, 0
    %v122 = vsel %vm106, 1, 0
    %v123 = vsel %vm107, 1, 0
    %v124 = vsel %vm108, 1, 0
    %v125 = vsel %vm109, 1, 0
    %v126 = vsel %vm110, 1, 0
    %v127 = vsel %vm111, 1, 0
    %v128 = vsel %vm112, 1, 0
    %v129 = vsel %vm113, 1, 0
    %v130 = vsel %vm114, 1, 0
    %v131 = vsel %vm115, 1, 0
    %v132 = vcvt.s32.f32 %v116
    %v133 = vcvt.s32.f32 %v117
    %v134 = vcvt.s32.f32 %v118
    %v135 = vcvt.s32.f32 %v119
    %v136 = vcvt.s32.f32 %v120
    %v137 = vcvt.s32.f32 %v121
    %v138 = vcvt.s32.f32 %v122
    %v139 = vcvt.s32.f32 %v123
    %v140 = vcvt.s32.f32 %v124
    %v141 = vcvt.s32.f32 %v125
    %v142 = vcvt.s32.f32 %v126
    %v143 = vcvt.s32.f32 %v127
    %v144 = vcvt.s32.f32 %v128
    %v145 = vcvt.s32.f32 %v129
    %v146 = vcvt.s32.f32 %v130
    %v147 = vcvt.s32.f32 %v131
    %148 = vset.pattern.permute.xlu0 0
    %149 = vperm.xlu0 %148, %v34
    %v150 = vpop.permute.xlu0 %149
    %151 = vset.pattern.permute.xlu0 0
    %152 = vperm.xlu0 %151, %v35
    %v153 = vpop.permute.xlu0 %152
    %154 = vset.pattern.permute.xlu0 0
    %155 = vperm.xlu0 %154, %v36
    %v156 = vpop.permute.xlu0 %155
    %157 = vset.pattern.permute.xlu0 0
    %158 = vperm.xlu0 %157, %v37
    %v159 = vpop.permute.xlu0 %158
    %160 = vset.pattern.permute.xlu0 0
    %161 = vperm.xlu0 %160, %v38
    %v162 = vpop.permute.xlu0 %161
    %163 = vset.pattern.permute.xlu0 0
    %164 = vperm.xlu0 %163, %v39
    %v165 = vpop.permute.xlu0 %164
    %166 = vset.pattern.permute.xlu0 0
    %167 = vperm.xlu0 %166, %v40
    %v168 = vpop.permute.xlu0 %167
    %169 = vset.pattern.permute.xlu0 0
    %170 = vperm.xlu0 %169, %v41
    %v171 = vpop.permute.xlu0 %170
    %172 = vset.pattern.permute.xlu0 0
    %173 = vperm.xlu0 %172, %v42
    %v174 = vpop.permute.xlu0 %173
    %175 = vset.pattern.permute.xlu0 0
    %176 = vperm.xlu0 %175, %v43
    %v177 = vpop.permute.xlu0 %176
    %178 = vset.pattern.permute.xlu0 0
    %179 = vperm.xlu0 %178, %v44
    %v180 = vpop.permute.xlu0 %179
    %181 = vset.pattern.permute.xlu0 0
    %182 = vperm.xlu0 %181, %v45
    %v183 = vpop.permute.xlu0 %182
    %184 = vset.pattern.permute.xlu0 0
    %185 = vperm.xlu0 %184, %v46
    %v186 = vpop.permute.xlu0 %185
    %187 = vset.pattern.permute.xlu0 0
    %188 = vperm.xlu0 %187, %v47
    %v189 = vpop.permute.xlu0 %188
    %190 = vset.pattern.permute.xlu0 0
    %191 = vperm.xlu0 %190, %v48
    %v192 = vpop.permute.xlu0 %191
    %193 = vset.pattern.permute.xlu0 0
    %194 = vperm.xlu0 %193, %v49
    %v195 = vpop.permute.xlu0 %194
    %vm196 = vcmp.eq.s32.totalorder %v150, %v51
    %vm197 = vcmp.eq.s32.totalorder %v153, %v51
    %vm198 = vcmp.eq.s32.totalorder %v156, %v51
    %vm199 = vcmp.eq.s32.totalorder %v159, %v51
    %vm200 = vcmp.eq.s32.totalorder %v162, %v51
    %vm201 = vcmp.eq.s32.totalorder %v165, %v51
    %vm202 = vcmp.eq.s32.totalorder %v168, %v51
    %vm203 = vcmp.eq.s32.totalorder %v171, %v51
    %vm204 = vcmp.eq.s32.totalorder %v174, %v51
    %vm205 = vcmp.eq.s32.totalorder %v177, %v51
    %vm206 = vcmp.eq.s32.totalorder %v180, %v51
    %vm207 = vcmp.eq.s32.totalorder %v183, %v51
    %vm208 = vcmp.eq.s32.totalorder %v186, %v51
    %vm209 = vcmp.eq.s32.totalorder %v189, %v51
    %vm210 = vcmp.eq.s32.totalorder %v192, %v51
    %vm211 = vcmp.eq.s32.totalorder %v195, %v51
    %v212 = vsel %vm196, 1, 0
    %v213 = vsel %vm197, 1, 0
    %v214 = vsel %vm198, 1, 0
    %v215 = vsel %vm199, 1, 0
    %v216 = vsel %vm200, 1, 0
    %v217 = vsel %vm201, 1, 0
    %v218 = vsel %vm202, 1, 0
    %v219 = vsel %vm203, 1, 0
    %v220 = vsel %vm204, 1, 0
    %v221 = vsel %vm205, 1, 0
    %v222 = vsel %vm206, 1, 0
    %v223 = vsel %vm207, 1, 0
    %v224 = vsel %vm208, 1, 0
    %v225 = vsel %vm209, 1, 0
    %v226 = vsel %vm210, 1, 0
    %v227 = vsel %vm211, 1, 0
    %v228 = vcvt.s32.f32 %v212
    %v229 = vcvt.s32.f32 %v213
    %v230 = vcvt.s32.f32 %v214
    %v231 = vcvt.s32.f32 %v215
    %v232 = vcvt.s32.f32 %v216
    %v233 = vcvt.s32.f32 %v217
    %v234 = vcvt.s32.f32 %v218
    %v235 = vcvt.s32.f32 %v219
    %v236 = vcvt.s32.f32 %v220
    %v237 = vcvt.s32.f32 %v221
    %v238 = vcvt.s32.f32 %v222
    %v239 = vcvt.s32.f32 %v223
    %v240 = vcvt.s32.f32 %v224
    %v241 = vcvt.s32.f32 %v225
    %v242 = vcvt.s32.f32 %v226
    %v243 = vcvt.s32.f32 %v227
    %v244 = vld [vmem:[%s2] sm:$0xff]
    %v245 = vld [vmem:[%s2 + $0x8] sm:$0xff]
    %v246 = vld [vmem:[%s2 + $0x10] sm:$0xff]
    %v247 = vld [vmem:[%s2 + $0x18] sm:$0xff]
    %v248 = vld [vmem:[%s2 + $0x20] sm:$0xff]
    %v249 = vld [vmem:[%s2 + $0x28] sm:$0xff]
    %v250 = vld [vmem:[%s2 + $0x30] sm:$0xff]
    %v251 = vld [vmem:[%s2 + $0x38] sm:$0xff]
    %vm252 = vcmask 523264
    %v254 = vsel %vm252, %v132, 0
    %v257 = vsel %vm252, %v133, 0
    %v260 = vsel %vm252, %v134, 0
    %v263 = vsel %vm252, %v135, 0
    %v266 = vsel %vm252, %v136, 0
    %v269 = vsel %vm252, %v137, 0
    %v272 = vsel %vm252, %v138, 0
    %v275 = vsel %vm252, %v139, 0
    %v278 = vsel %vm252, %v140, 0
    %v281 = vsel %vm252, %v141, 0
    %v284 = vsel %vm252, %v142, 0
    %v287 = vsel %vm252, %v143, 0
    %v290 = vsel %vm252, %v144, 0
    %v293 = vsel %vm252, %v145, 0
    %v296 = vsel %vm252, %v146, 0
    %v299 = vsel %vm252, %v147, 0
    %301 = vmatprep.subr.mxu0 0.0
    %302 = vmatpush1.msra.mxu0 0.0
    %303 = vmatprep.subr.mxu0 0.0
    %304 = vmatpush1.msra.mxu0 0.0
    %305 = vmatprep.subr.mxu0 0.0
    %306 = vmatpush1.msra.mxu0 0.0
    %307 = vmatprep.subr.mxu0 0.0
    %308 = vmatpush1.msra.mxu0 0.0
    %309 = vmatprep.subr.mxu0 0.0
    %310 = vmatpush1.msra.mxu0 0.0
    %311 = vmatprep.subr.mxu0 0.0
    %312 = vmatpush1.msra.mxu0 0.0
    %313 = vmatprep.subr.mxu0 0.0
    %314 = vmatpush1.msra.mxu0 0.0
    %315 = vmatprep.subr.mxu0 0.0
    %316 = vmatpush1.msra.mxu0 0.0
    %317 = vmatprep.subr.mxu0 0.0
    %318 = vmatpush1.msra.mxu0 %v251
    %319 = vmatprep.subr.mxu0 0.0
    %320 = vmatpush1.msra.mxu0 %v250
    %321 = vmatprep.subr.mxu0 0.0
    %322 = vmatpush1.msra.mxu0 %v249
    %323 = vmatprep.subr.mxu0 0.0
    %324 = vmatpush1.msra.mxu0 %v248
    %325 = vmatprep.subr.mxu0 0.0
    %326 = vmatpush1.msra.mxu0 %v247
    %327 = vmatprep.subr.mxu0 0.0
    %328 = vmatpush1.msra.mxu0 %v246
    %329 = vmatprep.subr.mxu0 0.0
    %330 = vmatpush1.msra.mxu0 %v245
    %331 = vmatprep.subr.mxu0 0.0
    %332 = vmatpush1.msra.mxu0 %v244
    %333 = vmatprep.subr.mxu0 0.0
    %334 = vmatpush2.msra.mxu0 0.0
    %335 = vmatprep.subr.mxu0 0.0
    %336 = vmatpush2.msra.mxu0 0.0
    %337 = vmatprep.subr.mxu0 0.0
    %338 = vmatpush2.msra.mxu0 0.0
    %339 = vmatprep.subr.mxu0 0.0
    %340 = vmatpush2.msra.mxu0 0.0
    %341 = vmatprep.subr.mxu0 0.0
    %342 = vmatpush2.msra.mxu0 0.0
    %343 = vmatprep.subr.mxu0 0.0
    %344 = vmatpush2.msra.mxu0 0.0
    %345 = vmatprep.subr.mxu0 0.0
    %346 = vmatpush2.msra.mxu0 0.0
    %347 = vmatprep.subr.mxu0 0.0
    %348 = vmatpush2.msra.mxu0 0.0
    %349 = vmatprep.subr.mxu0 0.0
    %350 = vmatpush2.msra.mxu0 0.0
    %351 = vmatprep.subr.mxu0 0.0
    %352 = vmatpush2.msra.mxu0 0.0
    %353 = vmatprep.subr.mxu0 0.0
    %354 = vmatpush2.msra.mxu0 0.0
    %355 = vmatprep.subr.mxu0 0.0
    %356 = vmatpush2.msra.mxu0 0.0
    %357 = vmatprep.subr.mxu0 0.0
    %358 = vmatpush2.msra.mxu0 0.0
    %359 = vmatprep.subr.mxu0 0.0
    %360 = vmatpush2.msra.mxu0 0.0
    %361 = vmatprep.subr.mxu0 0.0
    %362 = vmatpush2.msra.mxu0 0.0
    %363 = vmatprep.subr.mxu0 0.0
    %364 = vmatpush2.msra.mxu0 0.0
    %365 = vmatprep.mubr.f32.mxu0 0.0
    %366 = vmatmul.mubr.f32.gmra.mxu0 %v254
    %v367 = vpop.f32.mrf.mxu0
    %v368 = vadd.f32 0.0, %v367
    %v369 = vpop.f32.mrf.mxu0
    %370 = vmatprep.mubr.f32.mxu0 0.0
    %371 = vmatmul.mubr.f32.gmra.mxu0 %v257
    %v372 = vpop.f32.mrf.mxu0
    %v373 = vadd.f32 0.0, %v372
    %v374 = vpop.f32.mrf.mxu0
    %375 = vmatprep.mubr.f32.mxu0 0.0
    %376 = vmatmul.mubr.f32.gmra.mxu0 %v260
    %v377 = vpop.f32.mrf.mxu0
    %v378 = vadd.f32 0.0, %v377
    %v379 = vpop.f32.mrf.mxu0
    %380 = vmatprep.mubr.f32.mxu0 0.0
    %381 = vmatmul.mubr.f32.gmra.mxu0 %v263
    %v382 = vpop.f32.mrf.mxu0
    %v383 = vadd.f32 0.0, %v382
    %v384 = vpop.f32.mrf.mxu0
    %385 = vmatprep.mubr.f32.mxu0 0.0
    %386 = vmatmul.mubr.f32.gmra.mxu0 %v266
    %v387 = vpop.f32.mrf.mxu0
    %v388 = vadd.f32 0.0, %v387
    %v389 = vpop.f32.mrf.mxu0
    %390 = vmatprep.mubr.f32.mxu0 0.0
    %391 = vmatmul.mubr.f32.gmra.mxu0 %v269
    %v392 = vpop.f32.mrf.mxu0
    %v393 = vadd.f32 0.0, %v392
    %v394 = vpop.f32.mrf.mxu0
    %395 = vmatprep.mubr.f32.mxu0 0.0
    %396 = vmatmul.mubr.f32.gmra.mxu0 %v272
    %v397 = vpop.f32.mrf.mxu0
    %v398 = vadd.f32 0.0, %v397
    %v399 = vpop.f32.mrf.mxu0
    %400 = vmatprep.mubr.f32.mxu0 0.0
    %401 = vmatmul.mubr.f32.gmra.mxu0 %v275
    %v402 = vpop.f32.mrf.mxu0
    %v403 = vadd.f32 0.0, %v402
    %v404 = vpop.f32.mrf.mxu0
    %405 = vmatprep.mubr.f32.mxu0 0.0
    %406 = vmatmul.mubr.f32.gmra.mxu0 %v278
    %v407 = vpop.f32.mrf.mxu0
    %v408 = vadd.f32 0.0, %v407
    %v409 = vpop.f32.mrf.mxu0
    %410 = vmatprep.mubr.f32.mxu0 0.0
    %411 = vmatmul.mubr.f32.gmra.mxu0 %v281
    %v412 = vpop.f32.mrf.mxu0
    %v413 = vadd.f32 0.0, %v412
    %v414 = vpop.f32.mrf.mxu0
    %415 = vmatprep.mubr.f32.mxu0 0.0
    %416 = vmatmul.mubr.f32.gmra.mxu0 %v284
    %v417 = vpop.f32.mrf.mxu0
    %v418 = vadd.f32 0.0, %v417
    %v419 = vpop.f32.mrf.mxu0
    %420 = vmatprep.mubr.f32.mxu0 0.0
    %421 = vmatmul.mubr.f32.gmra.mxu0 %v287
    %v422 = vpop.f32.mrf.mxu0
    %v423 = vadd.f32 0.0, %v422
    %v424 = vpop.f32.mrf.mxu0
    %425 = vmatprep.mubr.f32.mxu0 0.0
    %426 = vmatmul.mubr.f32.gmra.mxu0 %v290
    %v427 = vpop.f32.mrf.mxu0
    %v428 = vadd.f32 0.0, %v427
    %v429 = vpop.f32.mrf.mxu0
    %430 = vmatprep.mubr.f32.mxu0 0.0
    %431 = vmatmul.mubr.f32.gmra.mxu0 %v293
    %v432 = vpop.f32.mrf.mxu0
    %v433 = vadd.f32 0.0, %v432
    %v434 = vpop.f32.mrf.mxu0
    %435 = vmatprep.mubr.f32.mxu0 0.0
    %436 = vmatmul.mubr.f32.gmra.mxu0 %v296
    %v437 = vpop.f32.mrf.mxu0
    %v438 = vadd.f32 0.0, %v437
    %v439 = vpop.f32.mrf.mxu0
    %440 = vmatprep.mubr.f32.mxu0 0.0
    %441 = vmatmul.mubr.f32.gmra.mxu0 %v299
    %v442 = vpop.f32.mrf.mxu0
    %v443 = vadd.f32 0.0, %v442
    %v444 = vpop.f32.mrf.mxu0
    %445 = vdwg.mxu0
    %v446 = vld [vmem:[%s3] sm:$0xff]
    %v447 = vld [vmem:[%s3 + $0x8] sm:$0xff]
    %v448 = vld [vmem:[%s3 + $0x10] sm:$0xff]
    %v449 = vld [vmem:[%s3 + $0x18] sm:$0xff]
    %v450 = vld [vmem:[%s3 + $0x20] sm:$0xff]
    %v451 = vld [vmem:[%s3 + $0x28] sm:$0xff]
    %v452 = vld [vmem:[%s3 + $0x30] sm:$0xff]
    %v453 = vld [vmem:[%s3 + $0x38] sm:$0xff]
    %v454 = vld [vmem:[%s3 + $0x40] sm:$0xff]
    %v455 = vld [vmem:[%s3 + $0x48] sm:$0xff]
    %v456 = vld [vmem:[%s3 + $0x50] sm:$0xff]
    %v457 = vld [vmem:[%s3 + $0x58] sm:$0xff]
    %v458 = vld [vmem:[%s3 + $0x60] sm:$0xff]
    %v459 = vld [vmem:[%s3 + $0x68] sm:$0xff]
    %v460 = vld [vmem:[%s3 + $0x70] sm:$0xff]
    %v461 = vld [vmem:[%s3 + $0x78] sm:$0xff]
    %462 = vmatprep.subr.mxu0 0.0
    %463 = vmatpush1.msra.mxu0 %v461
    %464 = vmatprep.subr.mxu0 0.0
    %465 = vmatpush1.msra.mxu0 %v460
    %466 = vmatprep.subr.mxu0 0.0
    %467 = vmatpush1.msra.mxu0 %v459
    %468 = vmatprep.subr.mxu0 0.0
    %469 = vmatpush1.msra.mxu0 %v458
    %470 = vmatprep.subr.mxu0 0.0
    %471 = vmatpush1.msra.mxu0 %v457
    %472 = vmatprep.subr.mxu0 0.0
    %473 = vmatpush1.msra.mxu0 %v456
    %474 = vmatprep.subr.mxu0 0.0
    %475 = vmatpush1.msra.mxu0 %v455
    %476 = vmatprep.subr.mxu0 0.0
    %477 = vmatpush1.msra.mxu0 %v454
    %478 = vmatprep.subr.mxu0 0.0
    %479 = vmatpush1.msra.mxu0 %v453
    %480 = vmatprep.subr.mxu0 0.0
    %481 = vmatpush1.msra.mxu0 %v452
    %482 = vmatprep.subr.mxu0 0.0
    %483 = vmatpush1.msra.mxu0 %v451
    %484 = vmatprep.subr.mxu0 0.0
    %485 = vmatpush1.msra.mxu0 %v450
    %486 = vmatprep.subr.mxu0 0.0
    %487 = vmatpush1.msra.mxu0 %v449
    %488 = vmatprep.subr.mxu0 0.0
    %489 = vmatpush1.msra.mxu0 %v448
    %490 = vmatprep.subr.mxu0 0.0
    %491 = vmatpush1.msra.mxu0 %v447
    %492 = vmatprep.subr.mxu0 0.0
    %493 = vmatpush1.msra.mxu0 %v446
    %494 = vmatprep.subr.mxu0 0.0
    %495 = vmatpush2.msra.mxu0 0.0
    %496 = vmatprep.subr.mxu0 0.0
    %497 = vmatpush2.msra.mxu0 0.0
    %498 = vmatprep.subr.mxu0 0.0
    %499 = vmatpush2.msra.mxu0 0.0
    %500 = vmatprep.subr.mxu0 0.0
    %501 = vmatpush2.msra.mxu0 0.0
    %502 = vmatprep.subr.mxu0 0.0
    %503 = vmatpush2.msra.mxu0 0.0
    %504 = vmatprep.subr.mxu0 0.0
    %505 = vmatpush2.msra.mxu0 0.0
    %506 = vmatprep.subr.mxu0 0.0
    %507 = vmatpush2.msra.mxu0 0.0
    %508 = vmatprep.subr.mxu0 0.0
    %509 = vmatpush2.msra.mxu0 0.0
    %510 = vmatprep.subr.mxu0 0.0
    %511 = vmatpush2.msra.mxu0 0.0
    %512 = vmatprep.subr.mxu0 0.0
    %513 = vmatpush2.msra.mxu0 0.0
    %514 = vmatprep.subr.mxu0 0.0
    %515 = vmatpush2.msra.mxu0 0.0
    %516 = vmatprep.subr.mxu0 0.0
    %517 = vmatpush2.msra.mxu0 0.0
    %518 = vmatprep.subr.mxu0 0.0
    %519 = vmatpush2.msra.mxu0 0.0
    %520 = vmatprep.subr.mxu0 0.0
    %521 = vmatpush2.msra.mxu0 0.0
    %522 = vmatprep.subr.mxu0 0.0
    %523 = vmatpush2.msra.mxu0 0.0
    %524 = vmatprep.subr.mxu0 0.0
    %525 = vmatpush2.msra.mxu0 0.0
    %526 = vmatprep.mubr.f32.mxu0 0.0
    %527 = vmatmul.mubr.f32.gmra.mxu0 %v228
    %v528 = vpop.f32.mrf.mxu0
    %v529 = vadd.f32 0.0, %v528
    %v530 = vpop.f32.mrf.mxu0
    %531 = vmatprep.mubr.f32.mxu0 0.0
    %532 = vmatmul.mubr.f32.gmra.mxu0 %v229
    %v533 = vpop.f32.mrf.mxu0
    %v534 = vadd.f32 0.0, %v533
    %v535 = vpop.f32.mrf.mxu0
    %536 = vmatprep.mubr.f32.mxu0 0.0
    %537 = vmatmul.mubr.f32.gmra.mxu0 %v230
    %v538 = vpop.f32.mrf.mxu0
    %v539 = vadd.f32 0.0, %v538
    %v540 = vpop.f32.mrf.mxu0
    %541 = vmatprep.mubr.f32.mxu0 0.0
    %542 = vmatmul.mubr.f32.gmra.mxu0 %v231
    %v543 = vpop.f32.mrf.mxu0
    %v544 = vadd.f32 0.0, %v543
    %v545 = vpop.f32.mrf.mxu0
    %546 = vmatprep.mubr.f32.mxu0 0.0
    %547 = vmatmul.mubr.f32.gmra.mxu0 %v232
    %v548 = vpop.f32.mrf.mxu0
    %v549 = vadd.f32 0.0, %v548
    %v550 = vpop.f32.mrf.mxu0
    %551 = vmatprep.mubr.f32.mxu0 0.0
    %552 = vmatmul.mubr.f32.gmra.mxu0 %v233
    %v553 = vpop.f32.mrf.mxu0
    %v554 = vadd.f32 0.0, %v553
    %v555 = vpop.f32.mrf.mxu0
    %556 = vmatprep.mubr.f32.mxu0 0.0
    %557 = vmatmul.mubr.f32.gmra.mxu0 %v234
    %v558 = vpop.f32.mrf.mxu0
    %v559 = vadd.f32 0.0, %v558
    %v560 = vpop.f32.mrf.mxu0
    %561 = vmatprep.mubr.f32.mxu0 0.0
    %562 = vmatmul.mubr.f32.gmra.mxu0 %v235
    %v563 = vpop.f32.mrf.mxu0
    %v564 = vadd.f32 0.0, %v563
    %v565 = vpop.f32.mrf.mxu0
    %566 = vmatprep.mubr.f32.mxu0 0.0
    %567 = vmatmul.mubr.f32.gmra.mxu0 %v236
    %v568 = vpop.f32.mrf.mxu0
    %v569 = vadd.f32 0.0, %v568
    %v570 = vpop.f32.mrf.mxu0
    %571 = vmatprep.mubr.f32.mxu0 0.0
    %572 = vmatmul.mubr.f32.gmra.mxu0 %v237
    %v573 = vpop.f32.mrf.mxu0
    %v574 = vadd.f32 0.0, %v573
    %v575 = vpop.f32.mrf.mxu0
    %576 = vmatprep.mubr.f32.mxu0 0.0
    %577 = vmatmul.mubr.f32.gmra.mxu0 %v238
    %v578 = vpop.f32.mrf.mxu0
    %v579 = vadd.f32 0.0, %v578
    %v580 = vpop.f32.mrf.mxu0
    %581 = vmatprep.mubr.f32.mxu0 0.0
    %582 = vmatmul.mubr.f32.gmra.mxu0 %v239
    %v583 = vpop.f32.mrf.mxu0
    %v584 = vadd.f32 0.0, %v583
    %v585 = vpop.f32.mrf.mxu0
    %586 = vmatprep.mubr.f32.mxu0 0.0
    %587 = vmatmul.mubr.f32.gmra.mxu0 %v240
    %v588 = vpop.f32.mrf.mxu0
    %v589 = vadd.f32 0.0, %v588
    %v590 = vpop.f32.mrf.mxu0
    %591 = vmatprep.mubr.f32.mxu0 0.0
    %592 = vmatmul.mubr.f32.gmra.mxu0 %v241
    %v593 = vpop.f32.mrf.mxu0
    %v594 = vadd.f32 0.0, %v593
    %v595 = vpop.f32.mrf.mxu0
    %596 = vmatprep.mubr.f32.mxu0 0.0
    %597 = vmatmul.mubr.f32.gmra.mxu0 %v242
    %v598 = vpop.f32.mrf.mxu0
    %v599 = vadd.f32 0.0, %v598
    %v600 = vpop.f32.mrf.mxu0
    %601 = vmatprep.mubr.f32.mxu0 0.0
    %602 = vmatmul.mubr.f32.gmra.mxu0 %v243
    %v603 = vpop.f32.mrf.mxu0
    %v604 = vadd.f32 0.0, %v603
    %v605 = vpop.f32.mrf.mxu0
    %606 = vdwg.mxu0
    %v607 = vmul.f32 %v368, %v529
    %v608 = vmul.f32 %v373, %v534
    %v609 = vmul.f32 %v378, %v539
    %v610 = vmul.f32 %v383, %v544
    %v611 = vmul.f32 %v388, %v549
    %v612 = vmul.f32 %v393, %v554
    %v613 = vmul.f32 %v398, %v559
    %v614 = vmul.f32 %v403, %v564
    %v615 = vmul.f32 %v408, %v569
    %v616 = vmul.f32 %v413, %v574
    %v617 = vmul.f32 %v418, %v579
    %v618 = vmul.f32 %v423, %v584
    %v619 = vmul.f32 %v428, %v589
    %v620 = vmul.f32 %v433, %v594
    %v621 = vmul.f32 %v438, %v599
    %v622 = vmul.f32 %v443, %v604
    %vm623 = vcmask 261120
    %v624 = vsel %vm623, %v607, 0.0
    %625 = vadd.xlane.f32.xlu0 %v624
    %v626 = vpop.xlane.xlu0 %625
    %v627 = vsel %vm623, %v608, 0.0
    %628 = vadd.xlane.f32.xlu0 %v627
    %v629 = vpop.xlane.xlu0 %628
    %v630 = vsel %vm623, %v609, 0.0
    %631 = vadd.xlane.f32.xlu0 %v630
    %v632 = vpop.xlane.xlu0 %631
    %v633 = vsel %vm623, %v610, 0.0
    %634 = vadd.xlane.f32.xlu0 %v633
    %v635 = vpop.xlane.xlu0 %634
    %v636 = vsel %vm623, %v611, 0.0
    %637 = vadd.xlane.f32.xlu0 %v636
    %v638 = vpop.xlane.xlu0 %637
    %v639 = vsel %vm623, %v612, 0.0
    %640 = vadd.xlane.f32.xlu0 %v639
    %v641 = vpop.xlane.xlu0 %640
    %v642 = vsel %vm623, %v613, 0.0
    %643 = vadd.xlane.f32.xlu0 %v642
    %v644 = vpop.xlane.xlu0 %643
    %v645 = vsel %vm623, %v614, 0.0
    %646 = vadd.xlane.f32.xlu0 %v645
    %v647 = vpop.xlane.xlu0 %646
    %v648 = vsel %vm623, %v615, 0.0
    %649 = vadd.xlane.f32.xlu0 %v648
    %v650 = vpop.xlane.xlu0 %649
    %v651 = vsel %vm623, %v616, 0.0
    %652 = vadd.xlane.f32.xlu0 %v651
    %v653 = vpop.xlane.xlu0 %652
    %v654 = vsel %vm623, %v617, 0.0
    %655 = vadd.xlane.f32.xlu0 %v654
    %v656 = vpop.xlane.xlu0 %655
    %v657 = vsel %vm623, %v618, 0.0
    %658 = vadd.xlane.f32.xlu0 %v657
    %v659 = vpop.xlane.xlu0 %658
    %v660 = vsel %vm623, %v619, 0.0
    %661 = vadd.xlane.f32.xlu0 %v660
    %v662 = vpop.xlane.xlu0 %661
    %v663 = vsel %vm623, %v620, 0.0
    %664 = vadd.xlane.f32.xlu0 %v663
    %v665 = vpop.xlane.xlu0 %664
    %v666 = vsel %vm623, %v621, 0.0
    %667 = vadd.xlane.f32.xlu0 %v666
    %v668 = vpop.xlane.xlu0 %667
    %v669 = vsel %vm623, %v622, 0.0
    %670 = vadd.xlane.f32.xlu0 %v669
    %v671 = vpop.xlane.xlu0 %670
    %v688 = vlaneseq
    %v689 = vshrl.u32 %v688, 7
    %v690 = vsub.s32 %v51, %v689
    %v691 = vrot.slane %v626, %v690
    %v692 = vadd.s32 %v51, 4294967288
    %v693 = vlaneseq
    %v694 = vshrl.u32 %v693, 7
    %v695 = vsub.s32 %v692, %v694
    %v696 = vrot.slane %v629, %v695
    %vm697 = vcmask 130112
    %v698 = vsel %vm697, %v696, %v691
    %v699 = vadd.s32 %v51, 4294967280
    %v700 = vlaneseq
    %v701 = vshrl.u32 %v700, 7
    %v702 = vsub.s32 %v699, %v701
    %v703 = vrot.slane %v632, %v702
    %vm704 = vcmask 195712
    %v705 = vsel %vm704, %v703, %v698
    %v706 = vadd.s32 %v51, 4294967272
    %v707 = vlaneseq
    %v708 = vshrl.u32 %v707, 7
    %v709 = vsub.s32 %v706, %v708
    %v710 = vrot.slane %v635, %v709
    %vm711 = vcmask 261312
    %v712 = vsel %vm711, %v710, %v705
    %v713 = vadd.s32 %v51, 4294967264
    %v714 = vlaneseq
    %v715 = vshrl.u32 %v714, 7
    %v716 = vsub.s32 %v713, %v715
    %v717 = vrot.slane %v638, %v716
    %vm718 = vcmask 326912
    %v719 = vsel %vm718, %v717, %v712
    %v720 = vadd.s32 %v51, 4294967256
    %v721 = vlaneseq
    %v722 = vshrl.u32 %v721, 7
    %v723 = vsub.s32 %v720, %v722
    %v724 = vrot.slane %v641, %v723
    %vm725 = vcmask 392512
    %v726 = vsel %vm725, %v724, %v719
    %v727 = vadd.s32 %v51, 4294967248
    %v728 = vlaneseq
    %v729 = vshrl.u32 %v728, 7
    %v730 = vsub.s32 %v727, %v729
    %v731 = vrot.slane %v644, %v730
    %vm732 = vcmask 458112
    %v733 = vsel %vm732, %v731, %v726
    %v734 = vadd.s32 %v51, 4294967240
    %v735 = vlaneseq
    %v736 = vshrl.u32 %v735, 7
    %v737 = vsub.s32 %v734, %v736
    %v738 = vrot.slane %v647, %v737
    %vm739 = vcmask 523712
    %v740 = vsel %vm739, %v738, %v733
    %v741 = vadd.s32 %v51, 4294967232
    %v742 = vlaneseq
    %v743 = vshrl.u32 %v742, 7
    %v744 = vsub.s32 %v741, %v743
    %v745 = vrot.slane %v650, %v744
    %vm746 = vcmask 589312
    %v747 = vsel %vm746, %v745, %v740
    %v748 = vadd.s32 %v51, 4294967224
    %v749 = vlaneseq
    %v750 = vshrl.u32 %v749, 7
    %v751 = vsub.s32 %v748, %v750
    %v752 = vrot.slane %v653, %v751
    %vm753 = vcmask 654912
    %v754 = vsel %vm753, %v752, %v747
    %v755 = vadd.s32 %v51, 4294967216
    %v756 = vlaneseq
    %v757 = vshrl.u32 %v756, 7
    %v758 = vsub.s32 %v755, %v757
    %v759 = vrot.slane %v656, %v758
    %vm760 = vcmask 720512
    %v761 = vsel %vm760, %v759, %v754
    %v762 = vadd.s32 %v51, 4294967208
    %v763 = vlaneseq
    %v764 = vshrl.u32 %v763, 7
    %v765 = vsub.s32 %v762, %v764
    %v766 = vrot.slane %v659, %v765
    %vm767 = vcmask 786112
    %v768 = vsel %vm767, %v766, %v761
    %v769 = vadd.s32 %v51, 4294967200
    %v770 = vlaneseq
    %v771 = vshrl.u32 %v770, 7
    %v772 = vsub.s32 %v769, %v771
    %v773 = vrot.slane %v662, %v772
    %vm774 = vcmask 851712
    %v775 = vsel %vm774, %v773, %v768
    %v776 = vadd.s32 %v51, 4294967192
    %v777 = vlaneseq
    %v778 = vshrl.u32 %v777, 7
    %v779 = vsub.s32 %v776, %v778
    %v780 = vrot.slane %v665, %v779
    %vm781 = vcmask 917312
    %v782 = vsel %vm781, %v780, %v775
    %v783 = vadd.s32 %v51, 4294967184
    %v784 = vlaneseq
    %v785 = vshrl.u32 %v784, 7
    %v786 = vsub.s32 %v783, %v785
    %v787 = vrot.slane %v668, %v786
    %vm788 = vcmask 982912
    %v789 = vsel %vm788, %v787, %v782
    %v790 = vadd.s32 %v51, 4294967176
    %v791 = vlaneseq
    %v792 = vshrl.u32 %v791, 7
    %v793 = vsub.s32 %v790, %v792
    %v794 = vrot.slane %v671, %v793
    %vm795 = vcmask 1048512
    %v796 = vsel %vm795, %v794, %v789
    %798 = vst [vmem:[#allocation2] sm:$0x1] %v796
    // Predicated region
    $region18: #{tpu_custom_call.1} parent=1 // pred_check
      _
    $region19: #{tpu_custom_call.1} parent=1 // pred_check_branch
      %800 = sbr.rel (0) target = $region21
    $region20: #{tpu_custom_call.1} parent=1 // pred_region
      %s802 = ssub.s32 16, 16
      %803 = vsyncadd [#allocation3], %s802
      %s805 = sshll.u32 [#allocation2], 4
      %s806 = int_to_ptr.vmem [resolvable:$true] %s805
      %808 = dma.vmem_to_hbm [thread:$0]  %s806, 16, %s4, [#allocation3]
    $region21: #{tpu_custom_call.1} parent=1 // pred_fallthru
      _
    // Predicated region
    $region22: #{tpu_custom_call.1} parent=1 // pred_check
      _
    $region23: #{tpu_custom_call.1} parent=1 // pred_check_branch
      %810 = sbr.rel (0) target = $region25
    $region24: #{tpu_custom_call.1} parent=1 // pred_region
      %811 = dma.done [#allocation3], 16
    $region25: #{tpu_custom_call.1} parent=1 // pred_fallthru
      _
    %812 = vsyncpa [#allocation3], 1

</llo_original>
